<compile_context>
chip_gen: v7x
topology: tpu7x:2x2x1
jax: 0.10.0
libtpu: 0.0.40
codegen_flags: <defaults>
</compile_context>

<pallas_src>
import functools

import jax
import jax.numpy as jnp
from jax.experimental import pallas as pl
from jax.experimental.pallas import tpu as pltpu


def _round_up(v, m):
    return (v + m - 1) // m * m


def _residual_kernel(scale_ref, x_ref, w_ref, b_ref, o_ref):
    """out = x + (x @ W + b) * scale[sample]   for one (sample, row, col) tile."""
    # scale_ref : SMEM (B,)  f32   per-sample drop-path scale
    # x_ref     : VMEM (TR, C)     activation row tile (full contraction dim)
    # w_ref     : VMEM (C, TN)     weight tile (resident across grid if TN == C)
    # b_ref     : VMEM (1, TN)     bias tile, f32
    # o_ref     : VMEM (TR, TN)
    c_full = x_ref.shape[-1]
    tn = o_ref.shape[-1]

    x = x_ref[...]
    # MXU matmul in the weight's dtype (bf16 recommended on v6e/v7x),
    # always accumulating in f32.
    y = jnp.dot(x.astype(w_ref.dtype), w_ref[...],
                preferred_element_type=jnp.float32)
    y = y + b_ref[...]                                   # f32 bias add

    s = scale_ref[pl.program_id(0)]                      # scalar read from SMEM

    if tn == c_full:
        # Single output-channel tile (common case): residual uses the whole x.
        xr = x
    else:
        # Weight tiled along its output dim: take the matching x column slab.
        off = pl.multiple_of(pl.program_id(2) * tn, 128)
        xr = x_ref[:, pl.ds(off, tn)]

    out = xr.astype(jnp.float32) + y * s                 # f32 residual add
    o_ref[...] = out.astype(o_ref.dtype)


def _choose_tiles(N, C, x_itemsize, w_itemsize, row_tile, col_tile):
    # Sublane packing of the activation dtype: 8 (f32), 16 (bf16), 32 (int8/fp8).
    sub = max(8, (8 * 4) // x_itemsize)

    # Output-channel tile: keep the (C, TN) weight tiles (x2 buffers) <= ~12 MiB
    # so the weight never blows scoped VMEM (16/32 MiB defaults, 64 MiB on v7x).
    if col_tile is not None:
        tn = col_tile
    elif C % 128 == 0 and 2 * C * C * w_itemsize > (12 << 20):
        tn = 128
        for cand in (2048, 1024, 512, 256, 128):
            if C % cand == 0 and 2 * C * cand * w_itemsize <= (12 << 20):
                tn = cand
                break
    else:
        tn = C

    # Row tile: large (amortize ~0.35us/step and approach the HBM roofline),
    # shrunk until the double-buffered x / out streams fit a ~16 MiB budget.
    tr = min(_round_up(row_tile, sub), _round_up(N, sub))
    cl, tnl = _round_up(C, 128), _round_up(tn, 128)

    def stream_bytes(t):
        return 2 * t * cl * x_itemsize + 2 * t * tnl * x_itemsize

    while tr > sub and stream_bytes(tr) > (16 << 20):
        tr = _round_up(tr // 2, sub)
    return tr, tn


def residual_forward(x, w, b, drop_scale, *, row_tile=512, col_tile=None,
                     matmul_dtype=jnp.bfloat16):
    """out = x + (x @ w + b) * drop_scale[:, None, None].

    x: (B, N, C), w: (C, C), b: (C,), drop_scale: (B,) -> out (B, N, C).
    matmul_dtype: MXU operand dtype (bf16 default for v5e/v6e/v7x throughput);
    pass None to keep x.dtype (exact f32). Accumulation / residual are f32.
    """
    B, N, C = x.shape
    x_isz = jnp.dtype(x.dtype).itemsize
    w2 = w if matmul_dtype is None else w.astype(matmul_dtype)
    w_isz = jnp.dtype(w2.dtype).itemsize
    b2 = b.astype(jnp.float32).reshape(1, C)             # tiny, one-time

    TR, TN = _choose_tiles(N, C, x_isz, w_isz, row_tile, col_tile)
    grid = (B, pl.cdiv(N, TR), pl.cdiv(C, TN))

    # VMEM accounting (layout-padded) -> explicit scoped-VMEM limit.
    cl, tnl, trl = _round_up(C, 128), _round_up(TN, 128), _round_up(TR, 8)
    vmem_need = (2 * trl * cl * x_isz          # x tiles   (double-buffered)
                 + 2 * cl * tnl * w_isz        # weight tiles
                 + 2 * 8 * tnl * 4             # bias tiles
                 + 2 * trl * tnl * x_isz)      # out tiles (double-buffered)
    vmem_limit = int(min(max(vmem_need + (8 << 20), 32 << 20), 96 << 20))

    cost = pl.CostEstimate(
        flops=2 * B * N * C * C + 3 * B * N * C,
        transcendentals=0,
        bytes_accessed=2 * B * N * C * x_isz + C * C * w_isz + C * 4 + B * 4)

    out = pl.pallas_call(
        _residual_kernel,
        out_shape=jax.ShapeDtypeStruct((B, N, C), x.dtype),
        grid=grid,
        in_specs=[
            # Per-sample drop-path scale: whole (B,) vector in SMEM.
            pl.BlockSpec(memory_space=pltpu.MemorySpace.SMEM),
            # x row tile with the full channel (K) dim; index is constant
            # across the col axis so it is fetched once per (sample, row tile).
            pl.BlockSpec((None, TR, C), lambda s, i, j: (s, i, 0)),
            # Weight: resident across the whole grid when TN == C, otherwise
            # streamed along the output-channel axis.
            pl.BlockSpec((C, TN), lambda s, i, j: (0, j)),
            pl.BlockSpec((1, TN), lambda s, i, j: (0, j)),
        ],
        out_specs=pl.BlockSpec((None, TR, TN), lambda s, i, j: (s, i, j)),
        compiler_params=pltpu.CompilerParams(
            dimension_semantics=("parallel", "parallel", "arbitrary"),
            vmem_limit_bytes=vmem_limit),
        cost_estimate=cost,
    )(drop_scale.astype(jnp.float32), x, w2, b2)
    return out


@functools.partial(
    jax.jit,
    static_argnames=("drop", "training", "matmul_dtype", "row_tile", "col_tile"))
def residual_apply(x, w, b, key, *, drop=0.0, training=False,
                   matmul_dtype=jnp.bfloat16, row_tile=512, col_tile=None):
    B = x.shape[0]
    if training and drop > 0:
        # PyTorch: rand(B,1,1).ge_(drop).div(1-drop) — per-sample keep/scale.
        keep = (jax.random.uniform(key, (B,)) >= drop).astype(jnp.float32)
        scale = keep / (1.0 - drop)
    else:
        scale = jnp.ones((B,), jnp.float32)
    return residual_forward(x, w, b, scale, row_tile=row_tile,
                            col_tile=col_tile, matmul_dtype=matmul_dtype)


if __name__ == "__main__":
    key = jax.random.PRNGKey(0)
    kx, kw, kb, kd, kx2, kw2, kb2 = jax.random.split(key, 7)

    # ---- small shape (matches the module demo) ---------------------------
    B, N, C = 2, 8, 32
    x = jax.random.normal(kx, (B, N, C), dtype=jnp.float32)
    w = jax.random.normal(kw, (C, C), dtype=jnp.float32) * (1.0 / (C ** 0.5))
    b = jax.random.normal(kb, (C,), dtype=jnp.float32) * 0.02

    # eval / drop==0, exact f32 operands:  out = x + (x @ W + b)
    out_eval = residual_apply(x, w, b, kd, drop=0.0, training=False,
                              matmul_dtype=None)
    out_eval = jax.block_until_ready(out_eval)
    ref_eval = x + (x @ w + b)
    assert jnp.allclose(out_eval, ref_eval, atol=1e-4, rtol=1e-4)

    # training drop-path: out = x + m(x) * per-sample mask / (1 - drop)
    out_train = residual_apply(x, w, b, kd, drop=0.5, training=True,
                               matmul_dtype=None)
    out_train = jax.block_until_ready(out_train)
    keep = (jax.random.uniform(kd, (B,)) >= 0.5).astype(jnp.float32) / 0.5
    ref_train = x + (x @ w + b) * keep[:, None, None]
    assert jnp.allclose(out_train, ref_train, atol=1e-4, rtol=1e-4)

    # default bf16-operand MXU path (f32 accumulation), looser tolerance
    out_bf16 = residual_apply(x, w, b, kd, drop=0.0, training=False)
    out_bf16 = jax.block_until_ready(out_bf16)
    assert jnp.allclose(out_bf16, ref_eval, atol=5e-2, rtol=5e-2)

    # ---- lane-dense shape exercising the output-channel-tiled weight path -
    B2, N2, C2 = 2, 16, 256
    x2 = jax.random.normal(kx2, (B2, N2, C2), dtype=jnp.float32)
    w2 = jax.random.normal(kw2, (C2, C2), dtype=jnp.float32) * (1.0 / (C2 ** 0.5))
    b2 = jax.random.normal(kb2, (C2,), dtype=jnp.float32) * 0.02
    out2 = residual_apply(x2, w2, b2, kd, drop=0.0, training=False,
                          matmul_dtype=None, col_tile=128)
    out2 = jax.block_until_ready(out2)
    ref2 = x2 + (x2 @ w2 + b2)
    assert jnp.allclose(out2, ref2, atol=2e-2, rtol=2e-2)

    print("KERNEL_OK")
</pallas_src>

<mosaic_0001>
module attributes {stable_mosaic.version = 11 : i64} {
  func.func @_residual_kernel(%arg0: i32, %arg1: i32, %arg2: i32, %arg3: memref<2xf32, #tpu.memory_space<smem>>, %arg4: memref<1x8x32xf32, #tpu.memory_space<vmem>>, %arg5: memref<32x32xf32, #tpu.memory_space<vmem>>, %arg6: memref<1x32xf32, #tpu.memory_space<vmem>>, %arg7: memref<1x8x32xf32, #tpu.memory_space<vmem>>) attributes {dimension_semantics = [#tpu.dimension_semantics<parallel>, #tpu.dimension_semantics<parallel>, #tpu.dimension_semantics<arbitrary>], iteration_bounds = array<i64: 2, 1, 1>, scalar_prefetch = 0 : i64, scratch_operands = 0 : i64, tpu.core_type = #tpu.core_type<tc>, window_params = [{transform_indices = @transform_0, window_bounds = array<i64: 2>}, {transform_indices = @transform_1, window_bounds = array<i64: 1, 8, 32>}, {transform_indices = @transform_2, window_bounds = array<i64: 32, 32>}, {transform_indices = @transform_3, window_bounds = array<i64: 1, 32>}, {transform_indices = @transform_4, window_bounds = array<i64: 1, 8, 32>}]} {
    %c0 = arith.constant 0 : index
    %c0_0 = arith.constant 0 : index
    %c0_1 = arith.constant 0 : index
    %0 = vector.load %arg4[%c0, %c0_0, %c0_1] : memref<1x8x32xf32, #tpu.memory_space<vmem>>, vector<1x8x32xf32>
    %1 = vector.shape_cast %0 : vector<1x8x32xf32> to vector<8x32xf32>
    %c0_2 = arith.constant 0 : index
    %c0_3 = arith.constant 0 : index
    %2 = vector.load %arg5[%c0_2, %c0_3] : memref<32x32xf32, #tpu.memory_space<vmem>>, vector<32x32xf32>
    %cst = arith.constant dense<0.000000e+00> : vector<8x32xf32>
    %3 = tpu.matmul %1, %2, %cst {dimension_numbers = #tpu.dot_dimension_numbers<[1], [0], [0], [1], [0, 0, 1, 1], [], []>} : vector<8x32xf32>, vector<32x32xf32>, vector<8x32xf32> -> vector<8x32xf32>
    %c0_4 = arith.constant 0 : index
    %c0_5 = arith.constant 0 : index
    %4 = vector.load %arg6[%c0_4, %c0_5] : memref<1x32xf32, #tpu.memory_space<vmem>>, vector<1x32xf32>
    %5 = vector.broadcast %4 : vector<1x32xf32> to vector<8x32xf32>
    %6 = arith.addf %3, %5 : vector<8x32xf32>
    %7 = arith.index_cast %arg0 : i32 to index
    %8 = memref.load %arg3[%7] : memref<2xf32, #tpu.memory_space<smem>>
    %9 = vector.broadcast %8 : f32 to vector<8x32xf32>
    %10 = arith.mulf %6, %9 : vector<8x32xf32>
    %11 = arith.addf %1, %10 : vector<8x32xf32>
    %c0_6 = arith.constant 0 : index
    %c0_7 = arith.constant 0 : index
    %c0_8 = arith.constant 0 : index
    %12 = vector.load %arg7[%c0_6, %c0_7, %c0_8] : memref<1x8x32xf32, #tpu.memory_space<vmem>>, vector<1x8x32xf32>
    %13 = vector.shape_cast %12 : vector<1x8x32xf32> to vector<8x32xf32>
    %14 = vector.shape_cast %11 : vector<8x32xf32> to vector<1x8x32xf32>
    tpu.vector_store %arg7[%c0_6, %c0_7, %c0_8], %14 {strides = array<i32>} : memref<1x8x32xf32, #tpu.memory_space<vmem>>, vector<1x8x32xf32>,
    return
  }
  func.func @transform_0(%arg0: i32, %arg1: i32, %arg2: i32) -> i32 {
    %c0_i32 = arith.constant 0 : i32
    %c0_i32_0 = arith.constant 0 : i32
    return %c0_i32 : i32
  }
  func.func @transform_1(%arg0: i32, %arg1: i32, %arg2: i32) -> (i32, i32, i32) {
    %c0_i32 = arith.constant 0 : i32
    %c0_i32_0 = arith.constant 0 : i32
    return %arg0, %arg1, %c0_i32 : i32, i32, i32
  }
  func.func @transform_2(%arg0: i32, %arg1: i32, %arg2: i32) -> (i32, i32) {
    %c0_i32 = arith.constant 0 : i32
    %c0_i32_0 = arith.constant 0 : i32
    return %c0_i32, %arg2 : i32, i32
  }
  func.func @transform_3(%arg0: i32, %arg1: i32, %arg2: i32) -> (i32, i32) {
    %c0_i32 = arith.constant 0 : i32
    %c0_i32_0 = arith.constant 0 : i32
    return %c0_i32, %arg2 : i32, i32
  }
  func.func @transform_4(%arg0: i32, %arg1: i32, %arg2: i32) -> (i32, i32, i32) {
    %c0_i32 = arith.constant 0 : i32
    return %arg0, %arg1, %arg2 : i32, i32, i32
  }
}

</mosaic_0001>

<llo_original>
// kernel: residual_apply.1
$region0: #{residual_apply.1}
  #allocation0 [shape = 'u32[]', space=smem, size = 0x4, offset = 0x4, fixed_abs, tag = 'smem constant byte address 0x4 - core index']
  #allocation1 [shape = 'u32[144,128]{1,0:T(1,128)}', space=vmem, size = 0x12000, scoped, tag = 'internal scratch']
  %s0 = inlined_call_operand.vmem [shape: f32[2], index: 0, kind: input, shape index: {}]
  %s1 = inlined_call_operand.hbm [shape: f32[2,8,32], index: 1, kind: input, shape index: {}]
  %s2 = inlined_call_operand.hbm [shape: f32[32,32], index: 2, kind: input, shape index: {}]
  %s3 = inlined_call_operand.vmem [shape: f32[1,32], index: 3, kind: input, shape index: {}]
  %s4 = inlined_call_operand.hbm [shape: f32[2,8,32], index: 4, kind: output, shape index: {}]
  %s5 = sld [smem:[#allocation0]]
  $region61: #{residual_apply.1} parent=0
    _
  %s7 = ssub.s32 1, %s5
  %s8 = scalar_select 0, %s7, %s5
  $region1: #{residual_apply.1} parent=0
    #allocation2 [shape = 'u8[512]{0}', space=smem, size = 0x200, scoped, tag = 'input window, operand 0, single buffered']
    #allocation3 [shape = 's32[2]{0}', space=sflag, size = 0x8, scoped, tag = 'scoped memory for residual_apply.1']
    #allocation4 [shape = 's32[2]{0}', space=sflag, size = 0x8, scoped, tag = 'scoped memory for residual_apply.1']
    #allocation5 [shape = 's32[2]{0}', space=sflag, size = 0x8, scoped, tag = 'scoped memory for residual_apply.1']
    #allocation6 [shape = 'u8[8192]{0}', space=vmem, size = 0x2000, scoped, tag = 'input window, operand 1']
    #allocation7 [shape = 'u8[16384]{0}', space=vmem, size = 0x4000, scoped, tag = 'input window, operand 2, single buffered']
    #allocation8 [shape = 's32[1]{0}', space=sflag, size = 0x4, scoped, tag = 'scoped memory for residual_apply.1']
    #allocation9 [shape = 'u8[8192]{0}', space=vmem, size = 0x2000, scoped, tag = 'output window, operand 0']
    %9 = vsyncpa [#allocation5], 0
    %10 = vsyncpa [#allocation3], 0
    %s11 = scalar_lea.sflag [#allocation3], 1
    %12 = vsyncpa %s11, 0
    %13 = vsyncpa [#allocation8], 0
    %14 = vsyncpa [#allocation4], 0
    %s15 = scalar_lea.sflag [#allocation4], 1
    %16 = vsyncpa %s15, 0
    loop: start=0, step=1, limit=4
    $region2: #{residual_apply.1} parent=1 // loop_pre_header
      _
    $region3: #{residual_apply.1} parent=1 // loop_header
      %s18 = sphi 0, %s22
      %p19 = scmp.ge.s32.totalorder %s18, 4
      %s25 = sphi 0, %s44
      %s26 = sphi 0, %s40
      %s27 = sphi 0, %s36
      %s28 = sphi 0, %s25
      %s29 = sphi 0, %s26
      %s30 = sphi 0, %s27
      %s31 = sphi 0, %s28
      %s32 = sphi 0, %s29
      %s33 = sphi 0, %s30
      %s45 = sphi 0, %s45
      %s47 = sphi 0, %s45
      %s48 = sphi 0, %s47
      %s62 = sphi 0, %s48
      %s70 = sphi 0, %s72
      %s73 = sphi 0, %s70
      %s74 = sphi 0, %s73
      %s90 = sphi 0, %s74
      %s96 = sphi 0, %s98
      %s99 = sphi 0, %s96
      %s100 = sphi 0, %s99
      %s116 = sphi 0, %s100
      %s122 = sphi 0, %s124
      %s125 = sphi 0, %s122
      %s126 = sphi 0, %s125
      %s142 = sphi 0, %s126
      %s152 = sphi 0, %s154
      %s155 = sphi 0, %s152
      %s156 = sphi 0, %s155
      %s172 = sphi 0, %s156
    $region4: #{residual_apply.1} parent=1 // loop_header_branch
      %21 = sbr.rel (%p19) target = $region8
    $region5: #{residual_apply.1} parent=1 // loop_body
      %s23 = ssub.s32 %s18, 1
      %s24 = ssub.s32 %s18, 2
      %s34 = sadd.s32 1, %s27
      %p35 = scmp.ge.s32.totalorder %s34, 1
      %s36 = scalar_select %p35, 0, %s34
      %s37 = sadd.s32 1, %s26
      %s38 = scalar_select %p35, %s37, %s26
      %p39 = scmp.ge.s32.totalorder %s38, 1
      %s40 = scalar_select %p39, 0, %s38
      %s41 = sadd.s32 1, %s25
      %s42 = scalar_select %p39, %s41, %s25
      %p43 = scmp.ge.s32.totalorder %s42, 2
      %s44 = scalar_select %p43, 0, %s42
      %s46 = sadd.s32 %s45, 1
      %p49 = scmp.eq.s32.totalorder %s18, 1
      %p50 = scmp.ne.s32.totalorder %s45, %s47
      %p51 = scmp.eq.s32.totalorder %s18, 0
      %p52 = por %p50, %p51
      %p53 = scmp.ne.s32.totalorder %s45, %s47
      %p54 = scmp.eq.s32.totalorder %s23, 1
      %p55 = por %p53, %p54
      %p56 = scmp.ne.s32.totalorder %s47, %s48
      %p57 = scmp.eq.s32.totalorder %s23, 0
      %p58 = por %p56, %p57
      %p59 = scmp.ne.s32.totalorder %s47, %s48
      %p60 = scmp.eq.s32.totalorder %s24, 1
      %p61 = por %p59, %p60
      %p63 = scmp.ne.s32.totalorder %s48, %s62
      %p64 = scmp.eq.s32.totalorder %s24, 0
      %p65 = por %p63, %p64
      %s66 = ssub.s32 %s25, %s44
      %s67 = ssub.s32 %s26, %s40
      %s68 = sor.u32 %s66, %s67
      %p69 = scmp.eq.s32.totalorder %s68, 0
      %s71 = sadd.s32 %s70, 1
      %s72 = scalar_select %p69, %s70, %s71
      %p75 = pneg %p69
      %p76 = scmp.eq.s32.totalorder %s18, 1
      %p77 = por %p75, %p76
      %p78 = scmp.ne.s32.totalorder %s70, %s73
      %p79 = scmp.eq.s32.totalorder %s18, 0
      %p80 = por %p78, %p79
      %p81 = scmp.ne.s32.totalorder %s70, %s73
      %p82 = scmp.eq.s32.totalorder %s23, 1
      %p83 = por %p81, %p82
      %p84 = scmp.ne.s32.totalorder %s73, %s74
      %p85 = scmp.eq.s32.totalorder %s23, 0
      %p86 = por %p84, %p85
      %p87 = scmp.ne.s32.totalorder %s73, %s74
      %p88 = scmp.eq.s32.totalorder %s24, 1
      %p89 = por %p87, %p88
      %p91 = scmp.ne.s32.totalorder %s74, %s90
      %p92 = scmp.eq.s32.totalorder %s24, 0
      %p93 = por %p91, %p92
      %s94 = ssub.s32 %s27, %s36
      %p95 = scmp.eq.s32.totalorder %s94, 0
      %s97 = sadd.s32 %s96, 1
      %s98 = scalar_select %p95, %s96, %s97
      %p101 = pneg %p95
      %p102 = scmp.eq.s32.totalorder %s18, 1
      %p103 = por %p101, %p102
      %p104 = scmp.ne.s32.totalorder %s96, %s99
      %p105 = scmp.eq.s32.totalorder %s18, 0
      %p106 = por %p104, %p105
      %p107 = scmp.ne.s32.totalorder %s96, %s99
      %p108 = scmp.eq.s32.totalorder %s23, 1
      %p109 = por %p107, %p108
      %p110 = scmp.ne.s32.totalorder %s99, %s100
      %p111 = scmp.eq.s32.totalorder %s23, 0
      %p112 = por %p110, %p111
      %p113 = scmp.ne.s32.totalorder %s99, %s100
      %p114 = scmp.eq.s32.totalorder %s24, 1
      %p115 = por %p113, %p114
      %p117 = scmp.ne.s32.totalorder %s100, %s116
      %p118 = scmp.eq.s32.totalorder %s24, 0
      %p119 = por %p117, %p118
      %s120 = ssub.s32 %s27, %s36
      %p121 = scmp.eq.s32.totalorder %s120, 0
      %s123 = sadd.s32 %s122, 1
      %s124 = scalar_select %p121, %s122, %s123
      %p127 = pneg %p121
      %p128 = scmp.eq.s32.totalorder %s18, 1
      %p129 = por %p127, %p128
      %p130 = scmp.ne.s32.totalorder %s122, %s125
      %p131 = scmp.eq.s32.totalorder %s18, 0
      %p132 = por %p130, %p131
      %p133 = scmp.ne.s32.totalorder %s122, %s125
      %p134 = scmp.eq.s32.totalorder %s23, 1
      %p135 = por %p133, %p134
      %p136 = scmp.ne.s32.totalorder %s125, %s126
      %p137 = scmp.eq.s32.totalorder %s23, 0
      %p138 = por %p136, %p137
      %p139 = scmp.ne.s32.totalorder %s125, %s126
      %p140 = scmp.eq.s32.totalorder %s24, 1
      %p141 = por %p139, %p140
      %p143 = scmp.ne.s32.totalorder %s126, %s142
      %p144 = scmp.eq.s32.totalorder %s24, 0
      %p145 = por %p143, %p144
      %s146 = ssub.s32 %s25, %s44
      %s147 = ssub.s32 %s26, %s40
      %s148 = sor.u32 %s146, %s147
      %s149 = ssub.s32 %s27, %s36
      %s150 = sor.u32 %s148, %s149
      %p151 = scmp.eq.s32.totalorder %s150, 0
      %s153 = sadd.s32 %s152, 1
      %s154 = scalar_select %p151, %s152, %s153
      %p157 = pneg %p151
      %p158 = scmp.eq.s32.totalorder %s18, 1
      %p159 = por %p157, %p158
      %p160 = scmp.ne.s32.totalorder %s152, %s155
      %p161 = scmp.eq.s32.totalorder %s18, 0
      %p162 = por %p160, %p161
      %p163 = scmp.ne.s32.totalorder %s152, %s155
      %p164 = scmp.eq.s32.totalorder %s23, 1
      %p165 = por %p163, %p164
      %p166 = scmp.ne.s32.totalorder %s155, %s156
      %p167 = scmp.eq.s32.totalorder %s23, 0
      %p168 = por %p166, %p167
      %p169 = scmp.ne.s32.totalorder %s155, %s156
      %p170 = scmp.eq.s32.totalorder %s24, 1
      %p171 = por %p169, %p170
      %p173 = scmp.ne.s32.totalorder %s156, %s172
      %p174 = scmp.eq.s32.totalorder %s24, 0
      %p175 = por %p173, %p174
      %p176 = scmp.le.s32.totalorder 1, %s18
      %p177 = scmp.lt.s32.totalorder %s18, 3
      %p178 = pnand %p176, %p177
      %p179 = pneg %p178
      // Predicated region
      $region9: #{residual_apply.1} parent=5 // pred_check
        _
      $region10: #{residual_apply.1} parent=5 // pred_check_branch
        %181 = sbr.rel (%p178) target = $region12
      $region11: #{residual_apply.1} parent=5 // pred_region
        %s182 = ssub.s32 %s18, 1
        // Predicated region
        $region13: #{residual_apply.1} parent=11 // pred_check
          %p183 = pneg %p58
        $region14: #{residual_apply.1} parent=11 // pred_check_branch
          %185 = sbr.rel (%p183) target = $region16
        $region15: #{residual_apply.1} parent=11 // pred_region
          %s187 = ssub.s32 16, 16
          %188 = vsyncadd [#allocation5], %s187
          %s190 = sshll.u32 %s0, 4
          %s191 = int_to_ptr.vmem [resolvable:$true] %s190
          %193 = dma.vmem_to_smem %s191, 16, [#allocation2], [#allocation5]
        $region16: #{residual_apply.1} parent=11 // pred_fallthru
          _
        // Predicated region
        $region17: #{residual_apply.1} parent=11 // pred_check
          %p194 = pneg %p112
        $region18: #{residual_apply.1} parent=11 // pred_check_branch
          %196 = sbr.rel (%p194) target = $region20
        $region19: #{residual_apply.1} parent=11 // pred_region
          %s198 = ssub.s32 512, 512
          %199 = vsyncadd [#allocation8], %s198
          %s200 = smul.addr %s30, 128
          %s201 = scalar_lea.hbm %s2, %s200
          %s202 = sshll.u32 [#allocation7], 4
          %s203 = int_to_ptr.vmem [resolvable:$true] %s202
          %208 = dma.hbm_to_vmem [thread:$0]  %s201, 512, %s203, [#allocation8], 128, 128, 8
        $region20: #{residual_apply.1} parent=11 // pred_fallthru
          _
        // Predicated region
        $region21: #{residual_apply.1} parent=11 // pred_check
          %p209 = pneg %p138
        $region22: #{residual_apply.1} parent=11 // pred_check_branch
          %211 = sbr.rel (%p209) target = $region24
        $region23: #{residual_apply.1} parent=11 // pred_region
          %p212 = scmp.lt.s32.totalorder %s30, 0
          %s213 = scalar_select %p212, %s30, 0
          %s214 = scalar_lea.vmem %s3, %s213
        $region24: #{residual_apply.1} parent=11 // pred_fallthru
          _
      $region12: #{residual_apply.1} parent=5 // pred_fallthru
        _
      %p215 = scmp.lt.s32.totalorder %s18, 2
      // Predicated region
      $region25: #{residual_apply.1} parent=5 // pred_check
        %p216 = pneg %p215
      $region26: #{residual_apply.1} parent=5 // pred_check_branch
        %218 = sbr.rel (%p216) target = $region28
      $region27: #{residual_apply.1} parent=5 // pred_region
        // Predicated region
        $region29: #{residual_apply.1} parent=27 // pred_check
          %p219 = pneg %p80
        $region30: #{residual_apply.1} parent=27 // pred_check_branch
          %221 = sbr.rel (%p219) target = $region32
        $region31: #{residual_apply.1} parent=27 // pred_region
          %s222 = sand.u32 %s70, 1
          %s223 = scalar_lea.sflag [#allocation3], %s222
          %s224 = sand.u32 %s70, 1
          %s225 = smul.addr %s224, 8
          %s226 = scalar_lea.vmem [#allocation6], %s225
          %s228 = ssub.s32 128, 128
          %229 = vsyncadd %s223, %s228
          %s230 = sadd.s32 %s26, %s25
          %s231 = smul.addr %s230, 128
          %s232 = scalar_lea.hbm %s1, %s231
          %s234 = sshll.u32 %s226, 4
          %s235 = int_to_ptr.vmem [resolvable:$true] %s234
          %237 = dma.hbm_to_vmem [thread:$0]  %s232, 128, %s235, %s223
        $region32: #{residual_apply.1} parent=27 // pred_fallthru
          _
      $region28: #{residual_apply.1} parent=5 // pred_fallthru
        _
      %p238 = scmp.le.s32.totalorder 1, %s18
      %p239 = scmp.lt.s32.totalorder %s18, 3
      %p240 = pnand %p238, %p239
      %p241 = pneg %p240
      // Predicated region
      $region33: #{residual_apply.1} parent=5 // pred_check
        _
      $region34: #{residual_apply.1} parent=5 // pred_check_branch
        %243 = sbr.rel (%p240) target = $region36
      $region35: #{residual_apply.1} parent=5 // pred_region
        %s244 = ssub.s32 %s18, 1
        // Predicated region
        $region37: #{residual_apply.1} parent=35 // pred_check
          %p245 = pneg %p58
        $region38: #{residual_apply.1} parent=35 // pred_check_branch
          %247 = sbr.rel (%p245) target = $region40
        $region39: #{residual_apply.1} parent=35 // pred_region
          %248 = dma.done [#allocation5], 16
        $region40: #{residual_apply.1} parent=35 // pred_fallthru
          _
        %s249 = sand.u32 %s73, 1
        %s250 = scalar_lea.sflag [#allocation3], %s249
        %s251 = sand.u32 %s73, 1
        %s252 = smul.addr %s251, 8
        %s253 = scalar_lea.vmem [#allocation6], %s252
        // Predicated region
        $region41: #{residual_apply.1} parent=35 // pred_check
          %p254 = pneg %p86
        $region42: #{residual_apply.1} parent=35 // pred_check_branch
          %256 = sbr.rel (%p254) target = $region44
        $region43: #{residual_apply.1} parent=35 // pred_region
          %257 = dma.done %s250, 128
        $region44: #{residual_apply.1} parent=35 // pred_fallthru
          _
        // Predicated region
        $region45: #{residual_apply.1} parent=35 // pred_check
          %p258 = pneg %p112
        $region46: #{residual_apply.1} parent=35 // pred_check_branch
          %260 = sbr.rel (%p258) target = $region48
        $region47: #{residual_apply.1} parent=35 // pred_region
          %261 = dma.done [#allocation8], 512
        $region48: #{residual_apply.1} parent=35 // pred_fallthru
          _
        %262 = sfence
        %p263 = pneg %p58
        %p264 = pneg %p55
        %s265 = sand.u32 %s73, 1
        %s266 = scalar_lea.sflag [#allocation3], %s265
        %s267 = sand.u32 %s73, 1
        %s268 = smul.addr %s267, 8
        %s269 = scalar_lea.vmem [#allocation6], %s268
        %p270 = pneg %p86
        %p271 = pneg %p83
        %p272 = pneg %p112
        %p273 = pneg %p109
        %p274 = scmp.lt.s32.totalorder %s30, 0
        %s275 = scalar_select %p274, %s30, 0
        %s276 = scalar_lea.vmem %s3, %s275
        %p277 = pneg %p138
        %p278 = pneg %p135
        %p279 = pneg %p168
        %p280 = pneg %p165
        %s281 = sand.u32 %s155, 1
        %s282 = scalar_lea.sflag [#allocation4], %s281
        %s283 = sand.u32 %s155, 1
        %s284 = smul.addr %s283, 8
        %s285 = scalar_lea.vmem [#allocation9], %s284
        %p286 = scmp.lt.s32.totalorder %s30, 0
        %s287 = scalar_select %p286, %s30, 0
        %s288 = scalar_lea.vmem %s3, %s287
        %v289 = vld [vmem:[%s253] sm:$0xff]
        %v290 = vld [vmem:[#allocation7] sm:$0xff]
        %v291 = vld [vmem:[#allocation7 + $0x8] sm:$0xff]
        %v292 = vld [vmem:[#allocation7 + $0x10] sm:$0xff]
        %v293 = vld [vmem:[#allocation7 + $0x18] sm:$0xff]
        %v294 = vld [vmem:[%s288] sm:$0x1]
        %v296 = vlaneseq
        %v297 = vshrl.u32 %v296, 7
        %v298 = vsub.s32 0, %v297
        %v299 = vrot.slane %v294, %v298
        %vm301 = vcmask 261120
        %v303 = vsel %vm301, %v289, 0
        %305 = vmatprep.subr.mxu0 0.0
        %306 = vmatpush1.msra.mxu0 %v290
        %307 = vmatprep.subr.mxu0 0.0
        %308 = vmatpush1.msra.mxu0 %v291
        %309 = vmatprep.subr.mxu0 0.0
        %310 = vmatpush1.msra.mxu0 %v292
        %311 = vmatprep.subr.mxu0 0.0
        %312 = vmatpush1.msra.mxu0 %v293
        %313 = vmatprep.subr.mxu0 0.0
        %314 = vmatpush1.msra.mxu0 0.0
        %315 = vmatprep.subr.mxu0 0.0
        %316 = vmatpush1.msra.mxu0 0.0
        %317 = vmatprep.subr.mxu0 0.0
        %318 = vmatpush1.msra.mxu0 0.0
        %319 = vmatprep.subr.mxu0 0.0
        %320 = vmatpush1.msra.mxu0 0.0
        %321 = vmatprep.subr.mxu0 0.0
        %322 = vmatpush1.msra.mxu0 0.0
        %323 = vmatprep.subr.mxu0 0.0
        %324 = vmatpush1.msra.mxu0 0.0
        %325 = vmatprep.subr.mxu0 0.0
        %326 = vmatpush1.msra.mxu0 0.0
        %327 = vmatprep.subr.mxu0 0.0
        %328 = vmatpush1.msra.mxu0 0.0
        %329 = vmatprep.subr.mxu0 0.0
        %330 = vmatpush1.msra.mxu0 0.0
        %331 = vmatprep.subr.mxu0 0.0
        %332 = vmatpush1.msra.mxu0 0.0
        %333 = vmatprep.subr.mxu0 0.0
        %334 = vmatpush1.msra.mxu0 0.0
        %335 = vmatprep.subr.mxu0 0.0
        %336 = vmatpush1.msra.mxu0 0.0
        %337 = vmatprep.subr.mxu0 0.0
        %338 = vmatpush1.msra.mxu0 0.0
        %339 = vmatprep.subr.mxu0 0.0
        %340 = vmatpush1.msra.mxu0 0.0
        %341 = vmatprep.subr.mxu0 0.0
        %342 = vmatpush1.msra.mxu0 0.0
        %343 = vmatprep.subr.mxu0 0.0
        %344 = vmatpush1.msra.mxu0 0.0
        %345 = vmatprep.subr.mxu0 0.0
        %346 = vmatpush1.msra.mxu0 0.0
        %347 = vmatprep.subr.mxu0 0.0
        %348 = vmatpush1.msra.mxu0 0.0
        %349 = vmatprep.subr.mxu0 0.0
        %350 = vmatpush1.msra.mxu0 0.0
        %351 = vmatprep.subr.mxu0 0.0
        %352 = vmatpush1.msra.mxu0 0.0
        %353 = vmatprep.subr.mxu0 0.0
        %354 = vmatpush1.msra.mxu0 0.0
        %355 = vmatprep.subr.mxu0 0.0
        %356 = vmatpush1.msra.mxu0 0.0
        %357 = vmatprep.subr.mxu0 0.0
        %358 = vmatpush1.msra.mxu0 0.0
        %359 = vmatprep.subr.mxu0 0.0
        %360 = vmatpush1.msra.mxu0 0.0
        %361 = vmatprep.subr.mxu0 0.0
        %362 = vmatpush1.msra.mxu0 0.0
        %363 = vmatprep.subr.mxu0 0.0
        %364 = vmatpush1.msra.mxu0 0.0
        %365 = vmatprep.subr.mxu0 0.0
        %366 = vmatpush1.msra.mxu0 0.0
        %367 = vmatprep.subr.mxu0 0.0
        %368 = vmatpush1.msra.mxu0 0.0
        %369 = vmatprep.mubr.f32.mxu0 0.0
        %370 = vmatmul.mubr.f32.gmra.mrb[0].mxu0 %v303
        %v371 = vpop.f32.mrb[0].mxu0
        %v372 = vadd.f32 %v299, %v371
        %v373 = vpop.f32.mrb[0].mxu0
        %374 = vdwg.mxu0
        %s375 = sld [smem:[#allocation2 + %s28]]
        %v376 = vstv %s375
        %v377 = vmul.f32 %v372, %v376
        %v378 = vadd.f32 %v289, %v377
        %379 = vst.msk [vmem:[%s285] sm:$0xff] %vm301, %v378
        %s380 = sand.u32 %s155, 1
        %s381 = scalar_lea.sflag [#allocation4], %s380
        %s382 = sand.u32 %s155, 1
        %s383 = smul.addr %s382, 8
        %s384 = scalar_lea.vmem [#allocation9], %s383
        // Predicated region
        $region49: #{residual_apply.1} parent=35 // pred_check
          %p385 = pneg %p165
        $region50: #{residual_apply.1} parent=35 // pred_check_branch
          %387 = sbr.rel (%p385) target = $region52
        $region51: #{residual_apply.1} parent=35 // pred_region
          %s389 = ssub.s32 128, 128
          %390 = vsyncadd %s381, %s389
          %s391 = sadd.s32 %s30, %s29
          %s392 = sadd.s32 %s391, %s28
          %s393 = smul.addr %s392, 128
          %s394 = scalar_lea.hbm %s4, %s393
          %s396 = sshll.u32 %s384, 4
          %s397 = int_to_ptr.vmem [resolvable:$true] %s396
          %399 = dma.vmem_to_hbm [thread:$0]  %s397, 128, %s394, %s381
        $region52: #{residual_apply.1} parent=35 // pred_fallthru
          _
      $region36: #{residual_apply.1} parent=5 // pred_fallthru
        _
      %p400 = scmp.le.s32.totalorder 2, %s18
      // Predicated region
      $region53: #{residual_apply.1} parent=5 // pred_check
        %p401 = pneg %p400
      $region54: #{residual_apply.1} parent=5 // pred_check_branch
        %403 = sbr.rel (%p401) target = $region56
      $region55: #{residual_apply.1} parent=5 // pred_region
        %s404 = ssub.s32 %s18, 2
        // Predicated region
        $region57: #{residual_apply.1} parent=55 // pred_check
          %p405 = pneg %p171
        $region58: #{residual_apply.1} parent=55 // pred_check_branch
          %407 = sbr.rel (%p405) target = $region60
        $region59: #{residual_apply.1} parent=55 // pred_region
          %s408 = sand.u32 %s156, 1
          %s409 = scalar_lea.sflag [#allocation4], %s408
          %s410 = sand.u32 %s156, 1
          %s411 = smul.addr %s410, 8
          %s412 = scalar_lea.vmem [#allocation9], %s411
          %413 = dma.done %s409, 128
        $region60: #{residual_apply.1} parent=55 // pred_fallthru
          _
      $region56: #{residual_apply.1} parent=5 // pred_fallthru
        _
    $region6: #{residual_apply.1} parent=1 // loop_footer
      %s22 = sadd.s32 1, %s18
    $region7: #{residual_apply.1} parent=1 // loop_footer_branch
      %17 = sbr.rel target = $region3
    $region8: #{residual_apply.1} parent=1 // loop_exit
      _
    %414 = vsyncpa [#allocation3], 1
    %s415 = scalar_lea.sflag [#allocation3], 1
    %416 = vsyncpa %s415, 1
    %417 = vsyncpa [#allocation8], 1
    %418 = vsyncpa [#allocation4], 1
    %s419 = scalar_lea.sflag [#allocation4], 1
    %420 = vsyncpa %s419, 1
    %421 = vsyncpa [#allocation5], 1
    %s422 = scalar_lea.sflag [#allocation5], 1
    %423 = vsyncpa %s422, 1

</llo_original>
